<compile_context>
chip_gen: v6e
topology: v6e:2x2x1
jax: 0.10.0
libtpu: 0.0.40
codegen_flags: <defaults>
</compile_context>

<pallas_src>
import functools

import jax
import jax.numpy as jnp
from jax.experimental import pallas as pl
from jax.experimental.pallas import tpu as pltpu

K = 5                 # conv kernel size
PAD = (K - 1) // 2    # "same" padding


def sab_kernel(w_ref, m_ref, x_ref, o_ref, *, W):
    # w_ref : (2*K*K,)    f32 SMEM  flattened conv weight, order [cin, kh, kw]
    # m_ref : (2*K, HW)   f32 VMEM  rows 0..K-1 = wmask(kw), K..2K-1 = hmask(kh)
    # x_ref : (Bt, C, HW) VMEM     lane-dense input tile
    # o_ref : (Bt, C, HW) VMEM     lane-dense output tile
    Bt, C, HW = x_ref.shape
    KK = K * K

    # --- ChannelPool: running max / sum over C, streamed in <=8-sublane
    #     chunks so the whole block is never live as one value.
    mx = None
    sm = None
    c0 = 0
    while c0 < C:
        ch = min(8, C - c0)
        blk = x_ref[:, c0:c0 + ch, :].astype(jnp.float32)      # (Bt, ch, HW)
        bmx = jnp.max(blk, axis=1)
        bsm = jnp.sum(blk, axis=1)
        mx = bmx if mx is None else jnp.maximum(mx, bmx)
        sm = bsm if sm is None else sm + bsm
        c0 += ch
    mn = sm * (1.0 / C)                                        # mean, (Bt, HW)

    # --- hoisted scalar weight loads (SMEM -> sregs), outside all loops.
    wv = [w_ref[i] for i in range(2 * KK)]

    # --- stack both pooled channels on the sublane axis: every roll / mask in
    #     the column stage then handles max AND mean with one instruction.
    P = jnp.concatenate([mx, mn], axis=0)                      # (2*Bt, HW)

    # --- stage 1: 5 column shifts (lane rolls, XLU) + precomputed wmask.
    # pltpu.roll has jnp.roll semantics: rolled[i] = src[(i - shift) % HW],
    # so shift = (-dw) % HW gives rolled[i] = src[i + dw]; the mask zeroes the
    # taps that would cross a row boundary.
    colP = []
    for kw in range(K):
        dw = kw - PAD
        r = P if dw == 0 else pltpu.roll(P, (-dw) % HW, 1)
        colP.append(r * m_ref[kw:kw + 1, :])                   # (2*Bt, HW)
    colMx = [c[:Bt, :] for c in colP]                          # max half
    colMn = [c[Bt:, :] for c in colP]                          # mean half

    # --- stage 2: per-row weighted sums over (cin, kw); 5 independent chains.
    R = []
    for kh in range(K):
        acc = None
        for kw in range(K):
            t = (wv[kh * K + kw] * colMx[kw]
                 + wv[KK + kh * K + kw] * colMn[kw])
            acc = t if acc is None else acc + t
        R.append(acc)                                          # (Bt, HW)

    # --- stage 3: 5 row shifts (lane rolls by dh*W) + hmask + accumulate.
    conv = None
    for kh in range(K):
        dh = kh - PAD
        r = R[kh] if dh == 0 else pltpu.roll(R[kh], (-dh * W) % HW, 1)
        t = r * m_ref[K + kh:K + kh + 1, :]
        conv = t if conv is None else conv + t                 # (Bt, HW)

    # --- ReLU -> sigmoid -> apply.  Re-read x_ref chunk-wise for the store
    #     (the input block is never kept live across the conv).
    scale = jax.nn.sigmoid(jnp.maximum(conv, 0.0))             # (Bt, HW)
    c0 = 0
    while c0 < C:
        ch = min(8, C - c0)
        xb = x_ref[:, c0:c0 + ch, :].astype(jnp.float32)
        o_ref[:, c0:c0 + ch, :] = (xb * scale[:, None, :]).astype(o_ref.dtype)
        c0 += ch


def sab_forward(x, w):
    """x: (N, C, H, W); w: (1, 2, K, K) conv weight (OIHW)."""
    N, C, H, W = x.shape
    HW = H * W
    x_flat = x.reshape(N, C, HW)                               # lane-dense layout
    w_flat = w.reshape(-1).astype(jnp.float32)                 # (2*K*K,), [cin,kh,kw]

    # Precomputed border masks (hoisted out of the kernel body).
    # wmask[kw][i] = 1 iff 0 <= (i % W) + (kw - PAD) < W
    # hmask[kh][i] = 1 iff 0 <= i + (kh - PAD)*W < HW
    idx = jnp.arange(HW, dtype=jnp.int32)
    wcol = idx % W
    wmask = jnp.stack([((wcol + (kw - PAD)) >= 0) & ((wcol + (kw - PAD)) < W)
                       for kw in range(K)])
    hmask = jnp.stack([((idx + (kh - PAD) * W) >= 0)
                       & ((idx + (kh - PAD) * W) < HW) for kh in range(K)])
    masks = jnp.concatenate([wmask, hmask], axis=0).astype(jnp.float32)  # (2K, HW)

    # --- block sizing with padded-C / padded-HW accounting -------------------
    itemsize = x.dtype.itemsize
    padded_c = -(-C // 8) * 8
    padded_hw = -(-HW // 128) * 128
    bytes_per_batch = padded_c * padded_hw * itemsize

    try:
        vmem_cap = pltpu.get_tpu_info().vmem_capacity_bytes
    except Exception:
        vmem_cap = 64 * 1024 * 1024                 # conservative (v7x-class)
    if vmem_cap <= 64 * 1024 * 1024:                # v7x: 64 MiB VMEM, 2 TCs
        block_cap_bytes = 4 * 1024 * 1024
        vmem_limit = 40 * 1024 * 1024
        two_core = True
    else:                                           # v5e / v6e: 128 MiB VMEM
        block_cap_bytes = 8 * 1024 * 1024
        vmem_limit = 64 * 1024 * 1024
        two_core = False

    cap = max(1, block_cap_bytes // bytes_per_batch)
    # v7x: keep >= 2 grid steps (one per TensorCore) when blocks stay >= ~1 MiB.
    if two_core and N >= 2 and (N // 2) * bytes_per_batch >= (1 << 20):
        cap = min(cap, max(1, N // 2))

    divs = [d for d in range(1, min(N, cap) + 1) if N % d == 0]
    mult8 = [d for d in divs if d % 8 == 0]
    Bt = max(mult8) if mult8 else max(divs)
    # TODO(synk): ragged / padded last block for awkward (e.g. prime) N; the
    # divisor-only search degrades to Bt=1 there (perf cliff, not a bug).

    flops = N * HW * (2 * C              # channel max + sum
                      + 4 * K * K + 4 * K  # factored 5x5x2 conv
                      + 2 * C + 4)         # scale apply + relu/sigmoid misc
    cost = pl.CostEstimate(
        flops=flops,
        transcendentals=N * HW,
        bytes_accessed=(2 * N * C * HW * itemsize
                        + masks.size * 4 + w_flat.size * 4),
    )

    kernel = functools.partial(sab_kernel, W=W)
    out_flat = pl.pallas_call(
        kernel,
        out_shape=jax.ShapeDtypeStruct((N, C, HW), x.dtype),
        grid_spec=pltpu.PrefetchScalarGridSpec(
            num_scalar_prefetch=0,
            grid=(N // Bt,),
            in_specs=[
                pl.BlockSpec(memory_space=pltpu.MemorySpace.SMEM),  # weights
                pl.BlockSpec((2 * K, HW), lambda b: (0, 0)),        # masks (resident)
                pl.BlockSpec((Bt, C, HW), lambda b: (b, 0, 0)),     # x tile
            ],
            out_specs=pl.BlockSpec((Bt, C, HW), lambda b: (b, 0, 0)),
        ),
        compiler_params=pltpu.CompilerParams(
            dimension_semantics=("parallel",),
            vmem_limit_bytes=vmem_limit,
        ),
        cost_estimate=cost,
    )(w_flat, masks, x_flat)
    return out_flat.reshape(N, C, H, W)


def sab_reference(x, w):
    """Pure-JAX reference of the PyTorch SAB forward."""
    mx = jnp.max(x, axis=1, keepdims=True)
    mn = jnp.mean(x, axis=1, keepdims=True)
    pooled = jnp.concatenate([mx, mn], axis=1)                     # (N, 2, H, W)
    conv = jax.lax.conv_general_dilated(
        pooled, w, window_strides=(1, 1),
        padding=((PAD, PAD), (PAD, PAD)),
        dimension_numbers=("NCHW", "OIHW", "NCHW"))                # (N, 1, H, W)
    scale = jax.nn.sigmoid(jnp.maximum(conv, 0.0))
    return x * scale


if __name__ == "__main__":
    key = jax.random.PRNGKey(0)
    kx, kw = jax.random.split(key)

    # Small deterministic inputs: batch=2, channels=4, spatial=16x16.
    x = jax.random.normal(kx, (2, 4, 16, 16), dtype=jnp.float32)
    # Deterministic synthetic conv weight, shape (out=1, in=2, 5, 5).
    w = 0.1 * jax.random.normal(kw, (1, 2, K, K), dtype=jnp.float32)

    out = sab_forward(x, w)
    out = jax.block_until_ready(out)

    ref = sab_reference(x, w)
    assert out.shape == x.shape and out.dtype == x.dtype
    assert jnp.allclose(out, ref, atol=1e-5, rtol=1e-5), "mismatch vs reference"

    print("KERNEL_OK")
</pallas_src>

<mosaic_0001>
module attributes {stable_mosaic.version = 11 : i64} {
  func.func @sab_kernel(%arg0: i32, %arg1: memref<50xf32, #tpu.memory_space<smem>>, %arg2: memref<10x256xf32, #tpu.memory_space<vmem>>, %arg3: memref<2x4x256xf32, #tpu.memory_space<vmem>>, %arg4: memref<2x4x256xf32, #tpu.memory_space<vmem>>) attributes {dimension_semantics = [#tpu.dimension_semantics<parallel>], iteration_bounds = array<i64: 1>, scalar_prefetch = 0 : i64, scratch_operands = 0 : i64, tpu.core_type = #tpu.core_type<tc>, window_params = [{transform_indices = @transform_0, window_bounds = array<i64: 50>}, {pipeline_mode = #tpu.pipeline_mode<synchronous>, transform_indices = @transform_1, window_bounds = array<i64: 10, 256>}, {transform_indices = @transform_2, window_bounds = array<i64: 2, 4, 256>}, {transform_indices = @transform_3, window_bounds = array<i64: 2, 4, 256>}]} {
    %c0 = arith.constant 0 : index
    %c0_0 = arith.constant 0 : index
    %c0_1 = arith.constant 0 : index
    %0 = vector.load %arg3[%c0, %c0_0, %c0_1] : memref<2x4x256xf32, #tpu.memory_space<vmem>>, vector<2x4x256xf32>
    %cst = arith.constant dense<0xFF800000> : vector<2x256xf32>
    %1 = vector.multi_reduction <maximumf>, %0, %cst [1] : vector<2x4x256xf32> to vector<2x256xf32>
    %cst_2 = arith.constant dense<0.000000e+00> : vector<2x256xf32>
    %2 = vector.multi_reduction <add>, %0, %cst_2 [1] : vector<2x4x256xf32> to vector<2x256xf32>
    %cst_3 = arith.constant 2.500000e-01 : f32
    %3 = vector.broadcast %cst_3 : f32 to vector<2x256xf32>
    %4 = arith.mulf %2, %3 : vector<2x256xf32>
    %c0_4 = arith.constant 0 : index
    %5 = memref.load %arg1[%c0_4] : memref<50xf32, #tpu.memory_space<smem>>
    %c1 = arith.constant 1 : index
    %6 = memref.load %arg1[%c1] : memref<50xf32, #tpu.memory_space<smem>>
    %c2 = arith.constant 2 : index
    %7 = memref.load %arg1[%c2] : memref<50xf32, #tpu.memory_space<smem>>
    %c3 = arith.constant 3 : index
    %8 = memref.load %arg1[%c3] : memref<50xf32, #tpu.memory_space<smem>>
    %c4 = arith.constant 4 : index
    %9 = memref.load %arg1[%c4] : memref<50xf32, #tpu.memory_space<smem>>
    %c5 = arith.constant 5 : index
    %10 = memref.load %arg1[%c5] : memref<50xf32, #tpu.memory_space<smem>>
    %c6 = arith.constant 6 : index
    %11 = memref.load %arg1[%c6] : memref<50xf32, #tpu.memory_space<smem>>
    %c7 = arith.constant 7 : index
    %12 = memref.load %arg1[%c7] : memref<50xf32, #tpu.memory_space<smem>>
    %c8 = arith.constant 8 : index
    %13 = memref.load %arg1[%c8] : memref<50xf32, #tpu.memory_space<smem>>
    %c9 = arith.constant 9 : index
    %14 = memref.load %arg1[%c9] : memref<50xf32, #tpu.memory_space<smem>>
    %c10 = arith.constant 10 : index
    %15 = memref.load %arg1[%c10] : memref<50xf32, #tpu.memory_space<smem>>
    %c11 = arith.constant 11 : index
    %16 = memref.load %arg1[%c11] : memref<50xf32, #tpu.memory_space<smem>>
    %c12 = arith.constant 12 : index
    %17 = memref.load %arg1[%c12] : memref<50xf32, #tpu.memory_space<smem>>
    %c13 = arith.constant 13 : index
    %18 = memref.load %arg1[%c13] : memref<50xf32, #tpu.memory_space<smem>>
    %c14 = arith.constant 14 : index
    %19 = memref.load %arg1[%c14] : memref<50xf32, #tpu.memory_space<smem>>
    %c15 = arith.constant 15 : index
    %20 = memref.load %arg1[%c15] : memref<50xf32, #tpu.memory_space<smem>>
    %c16 = arith.constant 16 : index
    %21 = memref.load %arg1[%c16] : memref<50xf32, #tpu.memory_space<smem>>
    %c17 = arith.constant 17 : index
    %22 = memref.load %arg1[%c17] : memref<50xf32, #tpu.memory_space<smem>>
    %c18 = arith.constant 18 : index
    %23 = memref.load %arg1[%c18] : memref<50xf32, #tpu.memory_space<smem>>
    %c19 = arith.constant 19 : index
    %24 = memref.load %arg1[%c19] : memref<50xf32, #tpu.memory_space<smem>>
    %c20 = arith.constant 20 : index
    %25 = memref.load %arg1[%c20] : memref<50xf32, #tpu.memory_space<smem>>
    %c21 = arith.constant 21 : index
    %26 = memref.load %arg1[%c21] : memref<50xf32, #tpu.memory_space<smem>>
    %c22 = arith.constant 22 : index
    %27 = memref.load %arg1[%c22] : memref<50xf32, #tpu.memory_space<smem>>
    %c23 = arith.constant 23 : index
    %28 = memref.load %arg1[%c23] : memref<50xf32, #tpu.memory_space<smem>>
    %c24 = arith.constant 24 : index
    %29 = memref.load %arg1[%c24] : memref<50xf32, #tpu.memory_space<smem>>
    %c25 = arith.constant 25 : index
    %30 = memref.load %arg1[%c25] : memref<50xf32, #tpu.memory_space<smem>>
    %c26 = arith.constant 26 : index
    %31 = memref.load %arg1[%c26] : memref<50xf32, #tpu.memory_space<smem>>
    %c27 = arith.constant 27 : index
    %32 = memref.load %arg1[%c27] : memref<50xf32, #tpu.memory_space<smem>>
    %c28 = arith.constant 28 : index
    %33 = memref.load %arg1[%c28] : memref<50xf32, #tpu.memory_space<smem>>
    %c29 = arith.constant 29 : index
    %34 = memref.load %arg1[%c29] : memref<50xf32, #tpu.memory_space<smem>>
    %c30 = arith.constant 30 : index
    %35 = memref.load %arg1[%c30] : memref<50xf32, #tpu.memory_space<smem>>
    %c31 = arith.constant 31 : index
    %36 = memref.load %arg1[%c31] : memref<50xf32, #tpu.memory_space<smem>>
    %c32 = arith.constant 32 : index
    %37 = memref.load %arg1[%c32] : memref<50xf32, #tpu.memory_space<smem>>
    %c33 = arith.constant 33 : index
    %38 = memref.load %arg1[%c33] : memref<50xf32, #tpu.memory_space<smem>>
    %c34 = arith.constant 34 : index
    %39 = memref.load %arg1[%c34] : memref<50xf32, #tpu.memory_space<smem>>
    %c35 = arith.constant 35 : index
    %40 = memref.load %arg1[%c35] : memref<50xf32, #tpu.memory_space<smem>>
    %c36 = arith.constant 36 : index
    %41 = memref.load %arg1[%c36] : memref<50xf32, #tpu.memory_space<smem>>
    %c37 = arith.constant 37 : index
    %42 = memref.load %arg1[%c37] : memref<50xf32, #tpu.memory_space<smem>>
    %c38 = arith.constant 38 : index
    %43 = memref.load %arg1[%c38] : memref<50xf32, #tpu.memory_space<smem>>
    %c39 = arith.constant 39 : index
    %44 = memref.load %arg1[%c39] : memref<50xf32, #tpu.memory_space<smem>>
    %c40 = arith.constant 40 : index
    %45 = memref.load %arg1[%c40] : memref<50xf32, #tpu.memory_space<smem>>
    %c41 = arith.constant 41 : index
    %46 = memref.load %arg1[%c41] : memref<50xf32, #tpu.memory_space<smem>>
    %c42 = arith.constant 42 : index
    %47 = memref.load %arg1[%c42] : memref<50xf32, #tpu.memory_space<smem>>
    %c43 = arith.constant 43 : index
    %48 = memref.load %arg1[%c43] : memref<50xf32, #tpu.memory_space<smem>>
    %c44 = arith.constant 44 : index
    %49 = memref.load %arg1[%c44] : memref<50xf32, #tpu.memory_space<smem>>
    %c45 = arith.constant 45 : index
    %50 = memref.load %arg1[%c45] : memref<50xf32, #tpu.memory_space<smem>>
    %c46 = arith.constant 46 : index
    %51 = memref.load %arg1[%c46] : memref<50xf32, #tpu.memory_space<smem>>
    %c47 = arith.constant 47 : index
    %52 = memref.load %arg1[%c47] : memref<50xf32, #tpu.memory_space<smem>>
    %c48 = arith.constant 48 : index
    %53 = memref.load %arg1[%c48] : memref<50xf32, #tpu.memory_space<smem>>
    %c49 = arith.constant 49 : index
    %54 = memref.load %arg1[%c49] : memref<50xf32, #tpu.memory_space<smem>>
    %55 = tpu.concatenate %1, %4 in 0 : vector<2x256xf32>, vector<2x256xf32> -> vector<4x256xf32>
    %c2_i32 = arith.constant 2 : i32
    %56 = tpu.dynamic_rotate %55 by %c2_i32 dim 1 : vector<4x256xf32>, i32 -> vector<4x256xf32>
    %c0_5 = arith.constant 0 : index
    %c0_6 = arith.constant 0 : index
    %57 = vector.load %arg2[%c0_5, %c0_6] : memref<10x256xf32, #tpu.memory_space<vmem>>, vector<1x256xf32>
    %58 = vector.broadcast %57 : vector<1x256xf32> to vector<4x256xf32>
    %59 = arith.mulf %56, %58 : vector<4x256xf32>
    %c1_i32 = arith.constant 1 : i32
    %60 = tpu.dynamic_rotate %55 by %c1_i32 dim 1 : vector<4x256xf32>, i32 -> vector<4x256xf32>
    %c1_7 = arith.constant 1 : index
    %c0_8 = arith.constant 0 : index
    %61 = vector.load %arg2[%c1_7, %c0_8] : memref<10x256xf32, #tpu.memory_space<vmem>>, vector<1x256xf32>
    %62 = vector.broadcast %61 : vector<1x256xf32> to vector<4x256xf32>
    %63 = arith.mulf %60, %62 : vector<4x256xf32>
    %c2_9 = arith.constant 2 : index
    %c0_10 = arith.constant 0 : index
    %64 = vector.load %arg2[%c2_9, %c0_10] : memref<10x256xf32, #tpu.memory_space<vmem>>, vector<1x256xf32>
    %65 = vector.broadcast %64 : vector<1x256xf32> to vector<4x256xf32>
    %66 = arith.mulf %55, %65 : vector<4x256xf32>
    %c255_i32 = arith.constant 255 : i32
    %67 = tpu.dynamic_rotate %55 by %c255_i32 dim 1 : vector<4x256xf32>, i32 -> vector<4x256xf32>
    %c3_11 = arith.constant 3 : index
    %c0_12 = arith.constant 0 : index
    %68 = vector.load %arg2[%c3_11, %c0_12] : memref<10x256xf32, #tpu.memory_space<vmem>>, vector<1x256xf32>
    %69 = vector.broadcast %68 : vector<1x256xf32> to vector<4x256xf32>
    %70 = arith.mulf %67, %69 : vector<4x256xf32>
    %c254_i32 = arith.constant 254 : i32
    %71 = tpu.dynamic_rotate %55 by %c254_i32 dim 1 : vector<4x256xf32>, i32 -> vector<4x256xf32>
    %c4_13 = arith.constant 4 : index
    %c0_14 = arith.constant 0 : index
    %72 = vector.load %arg2[%c4_13, %c0_14] : memref<10x256xf32, #tpu.memory_space<vmem>>, vector<1x256xf32>
    %73 = vector.broadcast %72 : vector<1x256xf32> to vector<4x256xf32>
    %74 = arith.mulf %71, %73 : vector<4x256xf32>
    %75 = vector.extract_strided_slice %59 {offsets = [0, 0], sizes = [2, 256], strides = [1, 1]} : vector<4x256xf32> to vector<2x256xf32>
    %76 = vector.extract_strided_slice %63 {offsets = [0, 0], sizes = [2, 256], strides = [1, 1]} : vector<4x256xf32> to vector<2x256xf32>
    %77 = vector.extract_strided_slice %66 {offsets = [0, 0], sizes = [2, 256], strides = [1, 1]} : vector<4x256xf32> to vector<2x256xf32>
    %78 = vector.extract_strided_slice %70 {offsets = [0, 0], sizes = [2, 256], strides = [1, 1]} : vector<4x256xf32> to vector<2x256xf32>
    %79 = vector.extract_strided_slice %74 {offsets = [0, 0], sizes = [2, 256], strides = [1, 1]} : vector<4x256xf32> to vector<2x256xf32>
    %80 = vector.extract_strided_slice %59 {offsets = [2, 0], sizes = [2, 256], strides = [1, 1]} : vector<4x256xf32> to vector<2x256xf32>
    %81 = vector.extract_strided_slice %63 {offsets = [2, 0], sizes = [2, 256], strides = [1, 1]} : vector<4x256xf32> to vector<2x256xf32>
    %82 = vector.extract_strided_slice %66 {offsets = [2, 0], sizes = [2, 256], strides = [1, 1]} : vector<4x256xf32> to vector<2x256xf32>
    %83 = vector.extract_strided_slice %70 {offsets = [2, 0], sizes = [2, 256], strides = [1, 1]} : vector<4x256xf32> to vector<2x256xf32>
    %84 = vector.extract_strided_slice %74 {offsets = [2, 0], sizes = [2, 256], strides = [1, 1]} : vector<4x256xf32> to vector<2x256xf32>
    %85 = vector.broadcast %5 : f32 to vector<2x256xf32>
    %86 = arith.mulf %85, %75 : vector<2x256xf32>
    %87 = vector.broadcast %30 : f32 to vector<2x256xf32>
    %88 = arith.mulf %87, %80 : vector<2x256xf32>
    %89 = arith.addf %86, %88 : vector<2x256xf32>
    %90 = vector.broadcast %6 : f32 to vector<2x256xf32>
    %91 = arith.mulf %90, %76 : vector<2x256xf32>
    %92 = vector.broadcast %31 : f32 to vector<2x256xf32>
    %93 = arith.mulf %92, %81 : vector<2x256xf32>
    %94 = arith.addf %91, %93 : vector<2x256xf32>
    %95 = arith.addf %89, %94 : vector<2x256xf32>
    %96 = vector.broadcast %7 : f32 to vector<2x256xf32>
    %97 = arith.mulf %96, %77 : vector<2x256xf32>
    %98 = vector.broadcast %32 : f32 to vector<2x256xf32>
    %99 = arith.mulf %98, %82 : vector<2x256xf32>
    %100 = arith.addf %97, %99 : vector<2x256xf32>
    %101 = arith.addf %95, %100 : vector<2x256xf32>
    %102 = vector.broadcast %8 : f32 to vector<2x256xf32>
    %103 = arith.mulf %102, %78 : vector<2x256xf32>
    %104 = vector.broadcast %33 : f32 to vector<2x256xf32>
    %105 = arith.mulf %104, %83 : vector<2x256xf32>
    %106 = arith.addf %103, %105 : vector<2x256xf32>
    %107 = arith.addf %101, %106 : vector<2x256xf32>
    %108 = vector.broadcast %9 : f32 to vector<2x256xf32>
    %109 = arith.mulf %108, %79 : vector<2x256xf32>
    %110 = vector.broadcast %34 : f32 to vector<2x256xf32>
    %111 = arith.mulf %110, %84 : vector<2x256xf32>
    %112 = arith.addf %109, %111 : vector<2x256xf32>
    %113 = arith.addf %107, %112 : vector<2x256xf32>
    %114 = vector.broadcast %10 : f32 to vector<2x256xf32>
    %115 = arith.mulf %114, %75 : vector<2x256xf32>
    %116 = vector.broadcast %35 : f32 to vector<2x256xf32>
    %117 = arith.mulf %116, %80 : vector<2x256xf32>
    %118 = arith.addf %115, %117 : vector<2x256xf32>
    %119 = vector.broadcast %11 : f32 to vector<2x256xf32>
    %120 = arith.mulf %119, %76 : vector<2x256xf32>
    %121 = vector.broadcast %36 : f32 to vector<2x256xf32>
    %122 = arith.mulf %121, %81 : vector<2x256xf32>
    %123 = arith.addf %120, %122 : vector<2x256xf32>
    %124 = arith.addf %118, %123 : vector<2x256xf32>
    %125 = vector.broadcast %12 : f32 to vector<2x256xf32>
    %126 = arith.mulf %125, %77 : vector<2x256xf32>
    %127 = vector.broadcast %37 : f32 to vector<2x256xf32>
    %128 = arith.mulf %127, %82 : vector<2x256xf32>
    %129 = arith.addf %126, %128 : vector<2x256xf32>
    %130 = arith.addf %124, %129 : vector<2x256xf32>
    %131 = vector.broadcast %13 : f32 to vector<2x256xf32>
    %132 = arith.mulf %131, %78 : vector<2x256xf32>
    %133 = vector.broadcast %38 : f32 to vector<2x256xf32>
    %134 = arith.mulf %133, %83 : vector<2x256xf32>
    %135 = arith.addf %132, %134 : vector<2x256xf32>
    %136 = arith.addf %130, %135 : vector<2x256xf32>
    %137 = vector.broadcast %14 : f32 to vector<2x256xf32>
    %138 = arith.mulf %137, %79 : vector<2x256xf32>
    %139 = vector.broadcast %39 : f32 to vector<2x256xf32>
    %140 = arith.mulf %139, %84 : vector<2x256xf32>
    %141 = arith.addf %138, %140 : vector<2x256xf32>
    %142 = arith.addf %136, %141 : vector<2x256xf32>
    %143 = vector.broadcast %15 : f32 to vector<2x256xf32>
    %144 = arith.mulf %143, %75 : vector<2x256xf32>
    %145 = vector.broadcast %40 : f32 to vector<2x256xf32>
    %146 = arith.mulf %145, %80 : vector<2x256xf32>
    %147 = arith.addf %144, %146 : vector<2x256xf32>
    %148 = vector.broadcast %16 : f32 to vector<2x256xf32>
    %149 = arith.mulf %148, %76 : vector<2x256xf32>
    %150 = vector.broadcast %41 : f32 to vector<2x256xf32>
    %151 = arith.mulf %150, %81 : vector<2x256xf32>
    %152 = arith.addf %149, %151 : vector<2x256xf32>
    %153 = arith.addf %147, %152 : vector<2x256xf32>
    %154 = vector.broadcast %17 : f32 to vector<2x256xf32>
    %155 = arith.mulf %154, %77 : vector<2x256xf32>
    %156 = vector.broadcast %42 : f32 to vector<2x256xf32>
    %157 = arith.mulf %156, %82 : vector<2x256xf32>
    %158 = arith.addf %155, %157 : vector<2x256xf32>
    %159 = arith.addf %153, %158 : vector<2x256xf32>
    %160 = vector.broadcast %18 : f32 to vector<2x256xf32>
    %161 = arith.mulf %160, %78 : vector<2x256xf32>
    %162 = vector.broadcast %43 : f32 to vector<2x256xf32>
    %163 = arith.mulf %162, %83 : vector<2x256xf32>
    %164 = arith.addf %161, %163 : vector<2x256xf32>
    %165 = arith.addf %159, %164 : vector<2x256xf32>
    %166 = vector.broadcast %19 : f32 to vector<2x256xf32>
    %167 = arith.mulf %166, %79 : vector<2x256xf32>
    %168 = vector.broadcast %44 : f32 to vector<2x256xf32>
    %169 = arith.mulf %168, %84 : vector<2x256xf32>
    %170 = arith.addf %167, %169 : vector<2x256xf32>
    %171 = arith.addf %165, %170 : vector<2x256xf32>
    %172 = vector.broadcast %20 : f32 to vector<2x256xf32>
    %173 = arith.mulf %172, %75 : vector<2x256xf32>
    %174 = vector.broadcast %45 : f32 to vector<2x256xf32>
    %175 = arith.mulf %174, %80 : vector<2x256xf32>
    %176 = arith.addf %173, %175 : vector<2x256xf32>
    %177 = vector.broadcast %21 : f32 to vector<2x256xf32>
    %178 = arith.mulf %177, %76 : vector<2x256xf32>
    %179 = vector.broadcast %46 : f32 to vector<2x256xf32>
    %180 = arith.mulf %179, %81 : vector<2x256xf32>
    %181 = arith.addf %178, %180 : vector<2x256xf32>
    %182 = arith.addf %176, %181 : vector<2x256xf32>
    %183 = vector.broadcast %22 : f32 to vector<2x256xf32>
    %184 = arith.mulf %183, %77 : vector<2x256xf32>
    %185 = vector.broadcast %47 : f32 to vector<2x256xf32>
    %186 = arith.mulf %185, %82 : vector<2x256xf32>
    %187 = arith.addf %184, %186 : vector<2x256xf32>
    %188 = arith.addf %182, %187 : vector<2x256xf32>
    %189 = vector.broadcast %23 : f32 to vector<2x256xf32>
    %190 = arith.mulf %189, %78 : vector<2x256xf32>
    %191 = vector.broadcast %48 : f32 to vector<2x256xf32>
    %192 = arith.mulf %191, %83 : vector<2x256xf32>
    %193 = arith.addf %190, %192 : vector<2x256xf32>
    %194 = arith.addf %188, %193 : vector<2x256xf32>
    %195 = vector.broadcast %24 : f32 to vector<2x256xf32>
    %196 = arith.mulf %195, %79 : vector<2x256xf32>
    %197 = vector.broadcast %49 : f32 to vector<2x256xf32>
    %198 = arith.mulf %197, %84 : vector<2x256xf32>
    %199 = arith.addf %196, %198 : vector<2x256xf32>
    %200 = arith.addf %194, %199 : vector<2x256xf32>
    %201 = vector.broadcast %25 : f32 to vector<2x256xf32>
    %202 = arith.mulf %201, %75 : vector<2x256xf32>
    %203 = vector.broadcast %50 : f32 to vector<2x256xf32>
    %204 = arith.mulf %203, %80 : vector<2x256xf32>
    %205 = arith.addf %202, %204 : vector<2x256xf32>
    %206 = vector.broadcast %26 : f32 to vector<2x256xf32>
    %207 = arith.mulf %206, %76 : vector<2x256xf32>
    %208 = vector.broadcast %51 : f32 to vector<2x256xf32>
    %209 = arith.mulf %208, %81 : vector<2x256xf32>
    %210 = arith.addf %207, %209 : vector<2x256xf32>
    %211 = arith.addf %205, %210 : vector<2x256xf32>
    %212 = vector.broadcast %27 : f32 to vector<2x256xf32>
    %213 = arith.mulf %212, %77 : vector<2x256xf32>
    %214 = vector.broadcast %52 : f32 to vector<2x256xf32>
    %215 = arith.mulf %214, %82 : vector<2x256xf32>
    %216 = arith.addf %213, %215 : vector<2x256xf32>
    %217 = arith.addf %211, %216 : vector<2x256xf32>
    %218 = vector.broadcast %28 : f32 to vector<2x256xf32>
    %219 = arith.mulf %218, %78 : vector<2x256xf32>
    %220 = vector.broadcast %53 : f32 to vector<2x256xf32>
    %221 = arith.mulf %220, %83 : vector<2x256xf32>
    %222 = arith.addf %219, %221 : vector<2x256xf32>
    %223 = arith.addf %217, %222 : vector<2x256xf32>
    %224 = vector.broadcast %29 : f32 to vector<2x256xf32>
    %225 = arith.mulf %224, %79 : vector<2x256xf32>
    %226 = vector.broadcast %54 : f32 to vector<2x256xf32>
    %227 = arith.mulf %226, %84 : vector<2x256xf32>
    %228 = arith.addf %225, %227 : vector<2x256xf32>
    %229 = arith.addf %223, %228 : vector<2x256xf32>
    %c32_i32 = arith.constant 32 : i32
    %230 = tpu.dynamic_rotate %113 by %c32_i32 dim 1 : vector<2x256xf32>, i32 -> vector<2x256xf32>
    %c5_15 = arith.constant 5 : index
    %c0_16 = arith.constant 0 : index
    %231 = vector.load %arg2[%c5_15, %c0_16] : memref<10x256xf32, #tpu.memory_space<vmem>>, vector<1x256xf32>
    %232 = vector.broadcast %231 : vector<1x256xf32> to vector<2x256xf32>
    %233 = arith.mulf %230, %232 : vector<2x256xf32>
    %c16_i32 = arith.constant 16 : i32
    %234 = tpu.dynamic_rotate %142 by %c16_i32 dim 1 : vector<2x256xf32>, i32 -> vector<2x256xf32>
    %c6_17 = arith.constant 6 : index
    %c0_18 = arith.constant 0 : index
    %235 = vector.load %arg2[%c6_17, %c0_18] : memref<10x256xf32, #tpu.memory_space<vmem>>, vector<1x256xf32>
    %236 = vector.broadcast %235 : vector<1x256xf32> to vector<2x256xf32>
    %237 = arith.mulf %234, %236 : vector<2x256xf32>
    %238 = arith.addf %233, %237 : vector<2x256xf32>
    %c7_19 = arith.constant 7 : index
    %c0_20 = arith.constant 0 : index
    %239 = vector.load %arg2[%c7_19, %c0_20] : memref<10x256xf32, #tpu.memory_space<vmem>>, vector<1x256xf32>
    %240 = vector.broadcast %239 : vector<1x256xf32> to vector<2x256xf32>
    %241 = arith.mulf %171, %240 : vector<2x256xf32>
    %242 = arith.addf %238, %241 : vector<2x256xf32>
    %c240_i32 = arith.constant 240 : i32
    %243 = tpu.dynamic_rotate %200 by %c240_i32 dim 1 : vector<2x256xf32>, i32 -> vector<2x256xf32>
    %c8_21 = arith.constant 8 : index
    %c0_22 = arith.constant 0 : index
    %244 = vector.load %arg2[%c8_21, %c0_22] : memref<10x256xf32, #tpu.memory_space<vmem>>, vector<1x256xf32>
    %245 = vector.broadcast %244 : vector<1x256xf32> to vector<2x256xf32>
    %246 = arith.mulf %243, %245 : vector<2x256xf32>
    %247 = arith.addf %242, %246 : vector<2x256xf32>
    %c224_i32 = arith.constant 224 : i32
    %248 = tpu.dynamic_rotate %229 by %c224_i32 dim 1 : vector<2x256xf32>, i32 -> vector<2x256xf32>
    %c9_23 = arith.constant 9 : index
    %c0_24 = arith.constant 0 : index
    %249 = vector.load %arg2[%c9_23, %c0_24] : memref<10x256xf32, #tpu.memory_space<vmem>>, vector<1x256xf32>
    %250 = vector.broadcast %249 : vector<1x256xf32> to vector<2x256xf32>
    %251 = arith.mulf %248, %250 : vector<2x256xf32>
    %252 = arith.addf %247, %251 : vector<2x256xf32>
    %cst_25 = arith.constant 0.000000e+00 : f32
    %253 = vector.broadcast %cst_25 : f32 to vector<2x256xf32>
    %254 = arith.maximumf %252, %253 : vector<2x256xf32>
    %255 = arith.negf %254 : vector<2x256xf32>
    %256 = math.exp %255 : vector<2x256xf32>
    %cst_26 = arith.constant 1.000000e+00 : f32
    %257 = vector.broadcast %cst_26 : f32 to vector<2x256xf32>
    %258 = arith.addf %257, %256 : vector<2x256xf32>
    %259 = arith.divf %257, %258 : vector<2x256xf32>
    %c0_27 = arith.constant 0 : index
    %c0_28 = arith.constant 0 : index
    %c0_29 = arith.constant 0 : index
    %260 = vector.load %arg3[%c0_27, %c0_28, %c0_29] : memref<2x4x256xf32, #tpu.memory_space<vmem>>, vector<2x4x256xf32>
    %261 = vector.shape_cast %259 : vector<2x256xf32> to vector<2x1x256xf32>
    %262 = vector.broadcast %261 : vector<2x1x256xf32> to vector<2x4x256xf32>
    %263 = arith.mulf %260, %262 : vector<2x4x256xf32>
    %c0_30 = arith.constant 0 : index
    %c0_31 = arith.constant 0 : index
    %c0_32 = arith.constant 0 : index
    %264 = vector.load %arg4[%c0_30, %c0_31, %c0_32] : memref<2x4x256xf32, #tpu.memory_space<vmem>>, vector<2x4x256xf32>
    tpu.vector_store %arg4[%c0_30, %c0_31, %c0_32], %263 {strides = array<i32>} : memref<2x4x256xf32, #tpu.memory_space<vmem>>, vector<2x4x256xf32>,
    return
  }
  func.func @transform_0(%arg0: i32) -> i32 {
    %c0_i32 = arith.constant 0 : i32
    %c0_i32_0 = arith.constant 0 : i32
    return %c0_i32 : i32
  }
  func.func @transform_1(%arg0: i32) -> (i32, i32) {
    %c0_i32 = arith.constant 0 : i32
    %c0_i32_0 = arith.constant 0 : i32
    %c0_i32_1 = arith.constant 0 : i32
    return %c0_i32, %c0_i32_0 : i32, i32
  }
  func.func @transform_2(%arg0: i32) -> (i32, i32, i32) {
    %c0_i32 = arith.constant 0 : i32
    %c0_i32_0 = arith.constant 0 : i32
    %c0_i32_1 = arith.constant 0 : i32
    return %arg0, %c0_i32, %c0_i32_0 : i32, i32, i32
  }
  func.func @transform_3(%arg0: i32) -> (i32, i32, i32) {
    %c0_i32 = arith.constant 0 : i32
    %c0_i32_0 = arith.constant 0 : i32
    %c0_i32_1 = arith.constant 0 : i32
    return %arg0, %c0_i32, %c0_i32_0 : i32, i32, i32
  }
}

</mosaic_0001>

<llo_original>
// kernel: tpu_custom_call.1
$region0: #{tpu_custom_call.1}
  #allocation0 [shape = 'u32[]', space=smem, size = 0x4, offset = 0x4, fixed_abs, tag = 'smem constant byte address 0x4 - core index']
  #allocation1 [shape = 'u32[144,128]{1,0:T(1,128)}', space=vmem, size = 0x12000, scoped, tag = 'internal scratch']
  %s0 = inlined_call_operand.hbm [shape: f32[50], index: 0, kind: input, shape index: {}]
  %s1 = inlined_call_operand.hbm [shape: f32[10,256], index: 1, kind: input, shape index: {}]
  %s2 = inlined_call_operand.hbm [shape: f32[2,4,256], index: 2, kind: input, shape index: {}]
  %s3 = inlined_call_operand.hbm [shape: f32[2,4,256], index: 3, kind: output, shape index: {}]
  %s4 = sld [smem:[#allocation0]]
  $region34: #{tpu_custom_call.1} parent=0
    _
  %s6 = ssub.s32 1, %s4
  %s7 = scalar_select 0, %s6, %s4
  $region1: #{tpu_custom_call.1} parent=0
    #allocation2 [shape = 'u8[512]{0}', space=smem, size = 0x200, scoped, tag = 'input window, operand 0, single buffered']
    #allocation3 [shape = 's32[1]{0}', space=sflag, size = 0x4, scoped, tag = 'scoped memory for tpu_custom_call.1']
    #allocation4 [shape = 's32[1]{0}', space=sflag, size = 0x4, scoped, tag = 'scoped memory for tpu_custom_call.1']
    #allocation5 [shape = 's32[1]{0}', space=sflag, size = 0x4, scoped, tag = 'scoped memory for tpu_custom_call.1']
    #allocation6 [shape = 'u8[16384]{0}', space=vmem, size = 0x4000, scoped, tag = 'input window, operand 1, single buffered']
    #allocation7 [shape = 'u8[8192]{0}', space=vmem, size = 0x2000, scoped, tag = 'input window, operand 2, single buffered']
    #allocation8 [shape = 's32[1]{0}', space=sflag, size = 0x4, scoped, tag = 'scoped memory for tpu_custom_call.1']
    #allocation9 [shape = 'u8[8192]{0}', space=vmem, size = 0x2000, scoped, tag = 'output window, operand 0, single buffered']
    %8 = vsyncpa [#allocation5], 0
    %9 = vsyncpa [#allocation3], 0
    %10 = vsyncpa [#allocation8], 0
    %11 = vsyncpa [#allocation4], 0
    // Predicated region
    $region2: #{tpu_custom_call.1} parent=1 // pred_check
      _
    $region3: #{tpu_custom_call.1} parent=1 // pred_check_branch
      %13 = sbr.rel (0) target = $region5
    $region4: #{tpu_custom_call.1} parent=1 // pred_region
      %s15 = ssub.s32 16, 16
      %16 = vsyncadd [#allocation5], %s15
      %19 = dma.hbm_to_smem %s0, 16, [#allocation2], [#allocation5]
    $region5: #{tpu_custom_call.1} parent=1 // pred_fallthru
      _
    // Predicated region
    $region6: #{tpu_custom_call.1} parent=1 // pred_check
      _
    $region7: #{tpu_custom_call.1} parent=1 // pred_check_branch
      %21 = sbr.rel (0) target = $region9
    $region8: #{tpu_custom_call.1} parent=1 // pred_region
      %s23 = ssub.s32 512, 512
      %24 = vsyncadd [#allocation3], %s23
      %s25 = sshll.u32 [#allocation6], 4
      %s26 = int_to_ptr.vmem [resolvable:$true] %s25
      %31 = dma.hbm_to_vmem [thread:$0]  %s1, 512, %s26, [#allocation3], 256, 256, 16
    $region9: #{tpu_custom_call.1} parent=1 // pred_fallthru
      _
    // Predicated region
    $region10: #{tpu_custom_call.1} parent=1 // pred_check
      _
    $region11: #{tpu_custom_call.1} parent=1 // pred_check_branch
      %33 = sbr.rel (0) target = $region13
    $region12: #{tpu_custom_call.1} parent=1 // pred_region
      %s35 = ssub.s32 256, 256
      %36 = vsyncadd [#allocation8], %s35
      %s37 = sshll.u32 [#allocation7], 4
      %s38 = int_to_ptr.vmem [resolvable:$true] %s37
      %43 = dma.hbm_to_vmem [thread:$0]  %s2, 256, %s38, [#allocation8], 128, 128, 8
    $region13: #{tpu_custom_call.1} parent=1 // pred_fallthru
      _
    // Predicated region
    $region14: #{tpu_custom_call.1} parent=1 // pred_check
      _
    $region15: #{tpu_custom_call.1} parent=1 // pred_check_branch
      %45 = sbr.rel (0) target = $region17
    $region16: #{tpu_custom_call.1} parent=1 // pred_region
      %46 = dma.done [#allocation5], 16
    $region17: #{tpu_custom_call.1} parent=1 // pred_fallthru
      _
    // Predicated region
    $region18: #{tpu_custom_call.1} parent=1 // pred_check
      _
    $region19: #{tpu_custom_call.1} parent=1 // pred_check_branch
      %48 = sbr.rel (0) target = $region21
    $region20: #{tpu_custom_call.1} parent=1 // pred_region
      %49 = dma.done [#allocation3], 512
    $region21: #{tpu_custom_call.1} parent=1 // pred_fallthru
      _
    // Predicated region
    $region22: #{tpu_custom_call.1} parent=1 // pred_check
      _
    $region23: #{tpu_custom_call.1} parent=1 // pred_check_branch
      %51 = sbr.rel (0) target = $region25
    $region24: #{tpu_custom_call.1} parent=1 // pred_region
      %52 = dma.done [#allocation8], 256
    $region25: #{tpu_custom_call.1} parent=1 // pred_fallthru
      _
    %53 = sfence
    %v54 = vld [vmem:[#allocation7] sm:$0xff]
    %v55 = vld [vmem:[#allocation7 + $0x8] sm:$0xff]
    %v58 = vcombine.high %v54, %v54
    %v59 = vcombine.high %v55, %v55
    %vm62 = vcmask 1043456
    %v63 = vsel %vm62, %v54, -inf
    %v64 = vrot.slane %v63, 4
    %v65 = vmax.f32 %v63, %v64
    %v66 = vrot.slane %v65, 2
    %v67 = vmax.f32 %v65, %v66
    %v68 = vrot.slane %v67, 1
    %v69 = vmax.f32 %v67, %v68
    %v70 = vsel %vm62, %v58, -inf
    %v71 = vrot.slane %v70, 4
    %v72 = vmax.f32 %v70, %v71
    %v73 = vrot.slane %v72, 2
    %v74 = vmax.f32 %v72, %v73
    %v75 = vrot.slane %v74, 1
    %v76 = vmax.f32 %v74, %v75
    %v77 = vsel %vm62, %v55, -inf
    %v78 = vrot.slane %v77, 4
    %v79 = vmax.f32 %v77, %v78
    %v80 = vrot.slane %v79, 2
    %v81 = vmax.f32 %v79, %v80
    %v82 = vrot.slane %v81, 1
    %v83 = vmax.f32 %v81, %v82
    %v84 = vsel %vm62, %v59, -inf
    %v85 = vrot.slane %v84, 4
    %v86 = vmax.f32 %v84, %v85
    %v87 = vrot.slane %v86, 2
    %v88 = vmax.f32 %v86, %v87
    %v89 = vrot.slane %v88, 1
    %v90 = vmax.f32 %v88, %v89
    %v91 = vsel %vm62, %v54, 0.0
    %v92 = vrot.slane %v91, 4
    %v93 = vadd.f32 %v91, %v92
    %v94 = vrot.slane %v93, 2
    %v95 = vadd.f32 %v93, %v94
    %v96 = vrot.slane %v95, 1
    %v97 = vadd.f32 %v95, %v96
    %v98 = vsel %vm62, %v58, 0.0
    %v99 = vrot.slane %v98, 4
    %v100 = vadd.f32 %v98, %v99
    %v101 = vrot.slane %v100, 2
    %v102 = vadd.f32 %v100, %v101
    %v103 = vrot.slane %v102, 1
    %v104 = vadd.f32 %v102, %v103
    %v105 = vsel %vm62, %v55, 0.0
    %v106 = vrot.slane %v105, 4
    %v107 = vadd.f32 %v105, %v106
    %v108 = vrot.slane %v107, 2
    %v109 = vadd.f32 %v107, %v108
    %v110 = vrot.slane %v109, 1
    %v111 = vadd.f32 %v109, %v110
    %v112 = vsel %vm62, %v59, 0.0
    %v113 = vrot.slane %v112, 4
    %v114 = vadd.f32 %v112, %v113
    %v115 = vrot.slane %v114, 2
    %v116 = vadd.f32 %v114, %v115
    %v117 = vrot.slane %v116, 1
    %v118 = vadd.f32 %v116, %v117
    %v119 = vmul.f32 %v97, 0.25
    %v120 = vmul.f32 %v104, 0.25
    %v121 = vmul.f32 %v111, 0.25
    %v122 = vmul.f32 %v118, 0.25
    %s123 = sld [smem:[#allocation2]]
    %s124 = sld [smem:[#allocation2 + $0x1]]
    %s125 = sld [smem:[#allocation2 + $0x2]]
    %s126 = sld [smem:[#allocation2 + $0x3]]
    %s127 = sld [smem:[#allocation2 + $0x4]]
    %s128 = sld [smem:[#allocation2 + $0x5]]
    %s129 = sld [smem:[#allocation2 + $0x6]]
    %s130 = sld [smem:[#allocation2 + $0x7]]
    %s131 = sld [smem:[#allocation2 + $0x8]]
    %s132 = sld [smem:[#allocation2 + $0x9]]
    %s133 = sld [smem:[#allocation2 + $0xa]]
    %s134 = sld [smem:[#allocation2 + $0xb]]
    %s135 = sld [smem:[#allocation2 + $0xc]]
    %s136 = sld [smem:[#allocation2 + $0xd]]
    %s137 = sld [smem:[#allocation2 + $0xe]]
    %s138 = sld [smem:[#allocation2 + $0xf]]
    %s139 = sld [smem:[#allocation2 + $0x10]]
    %s140 = sld [smem:[#allocation2 + $0x11]]
    %s141 = sld [smem:[#allocation2 + $0x12]]
    %s142 = sld [smem:[#allocation2 + $0x13]]
    %s143 = sld [smem:[#allocation2 + $0x14]]
    %s144 = sld [smem:[#allocation2 + $0x15]]
    %s145 = sld [smem:[#allocation2 + $0x16]]
    %s146 = sld [smem:[#allocation2 + $0x17]]
    %s147 = sld [smem:[#allocation2 + $0x18]]
    %s148 = sld [smem:[#allocation2 + $0x19]]
    %s149 = sld [smem:[#allocation2 + $0x1a]]
    %s150 = sld [smem:[#allocation2 + $0x1b]]
    %s151 = sld [smem:[#allocation2 + $0x1c]]
    %s152 = sld [smem:[#allocation2 + $0x1d]]
    %s153 = sld [smem:[#allocation2 + $0x1e]]
    %s154 = sld [smem:[#allocation2 + $0x1f]]
    %s155 = sld [smem:[#allocation2 + $0x20]]
    %s156 = sld [smem:[#allocation2 + $0x21]]
    %s157 = sld [smem:[#allocation2 + $0x22]]
    %s158 = sld [smem:[#allocation2 + $0x23]]
    %s159 = sld [smem:[#allocation2 + $0x24]]
    %s160 = sld [smem:[#allocation2 + $0x25]]
    %s161 = sld [smem:[#allocation2 + $0x26]]
    %s162 = sld [smem:[#allocation2 + $0x27]]
    %s163 = sld [smem:[#allocation2 + $0x28]]
    %s164 = sld [smem:[#allocation2 + $0x29]]
    %s165 = sld [smem:[#allocation2 + $0x2a]]
    %s166 = sld [smem:[#allocation2 + $0x2b]]
    %s167 = sld [smem:[#allocation2 + $0x2c]]
    %s168 = sld [smem:[#allocation2 + $0x2d]]
    %s169 = sld [smem:[#allocation2 + $0x2e]]
    %s170 = sld [smem:[#allocation2 + $0x2f]]
    %s171 = sld [smem:[#allocation2 + $0x30]]
    %s172 = sld [smem:[#allocation2 + $0x31]]
    %vm177 = vcmask 1041409
    %v178 = vsel %vm177, %v83, %v69
    %v179 = vsel %vm177, %v90, %v76
    %vm186 = vcmask 1043459
    %v187 = vsel %vm186, %v121, %v119
    %v188 = vsel %vm186, %v122, %v120
    %vm191 = vcmask 1041408
    %v192 = vsel %vm191, %v178, %v187
    %v193 = vsel %vm191, %v179, %v188
    %194 = vrot.lane.b32.xlu0 %v192, 2
    %v195 = vpop.permute.xlu0 %194
    %196 = vrot.lane.b32.xlu0 %v193, 2
    %v197 = vpop.permute.xlu0 %196
    %v198 = vlaneseq
    %v199 = vand.u32 %v198, 127
    %vm200 = vcmp.lt.s32.totalorder %v199, 2
    %v201 = vsel %vm200, %v195, %v197
    %v202 = vsel %vm200, %v197, %v195
    %v203 = vld [vmem:[#allocation6] ss:$8 sm:$0x3]
    %v205 = vlaneseq
    %v206 = vshrl.u32 %v205, 7
    %v207 = vsub.s32 0, %v206
    %v208 = vrot.slane %v203, %v207
    %v209 = vlaneseq
    %v210 = vshrl.u32 %v209, 7
    %v211 = vsub.s32 1, %v210
    %v212 = vrot.slane %v203, %v211
    %v215 = vmul.f32 %v202, %v208
    %v216 = vmul.f32 %v201, %v212
    %217 = vrot.lane.b32.xlu0 %v192, 1
    %v218 = vpop.permute.xlu0 %217
    %219 = vrot.lane.b32.xlu0 %v193, 1
    %v220 = vpop.permute.xlu0 %219
    %vm221 = vcmp.lt.s32.totalorder %v199, 1
    %v222 = vsel %vm221, %v218, %v220
    %v223 = vsel %vm221, %v220, %v218
    %s224 = scalar_lea.vmem [#allocation6], 1
    %v225 = vld [vmem:[%s224] ss:$8 sm:$0x3]
    %v227 = vlaneseq
    %v228 = vshrl.u32 %v227, 7
    %v229 = vsub.s32 0, %v228
    %v230 = vrot.slane %v225, %v229
    %v231 = vlaneseq
    %v232 = vshrl.u32 %v231, 7
    %v233 = vsub.s32 1, %v232
    %v234 = vrot.slane %v225, %v233
    %v237 = vmul.f32 %v223, %v230
    %v238 = vmul.f32 %v222, %v234
    %s239 = scalar_lea.vmem [#allocation6], 2
    %v240 = vld [vmem:[%s239] ss:$8 sm:$0x3]
    %v242 = vlaneseq
    %v243 = vshrl.u32 %v242, 7
    %v244 = vsub.s32 0, %v243
    %v245 = vrot.slane %v240, %v244
    %v246 = vlaneseq
    %v247 = vshrl.u32 %v246, 7
    %v248 = vsub.s32 1, %v247
    %v249 = vrot.slane %v240, %v248
    %v252 = vmul.f32 %v192, %v245
    %v253 = vmul.f32 %v193, %v249
    %254 = vrot.lane.b32.xlu0 %v192, 127
    %v255 = vpop.permute.xlu0 %254
    %256 = vrot.lane.b32.xlu0 %v193, 127
    %v257 = vpop.permute.xlu0 %256
    %vm258 = vcmp.lt.s32.totalorder %v199, 127
    %v259 = vsel %vm258, %v255, %v257
    %v260 = vsel %vm258, %v257, %v255
    %s261 = scalar_lea.vmem [#allocation6], 3
    %v262 = vld [vmem:[%s261] ss:$8 sm:$0x3]
    %v264 = vlaneseq
    %v265 = vshrl.u32 %v264, 7
    %v266 = vsub.s32 0, %v265
    %v267 = vrot.slane %v262, %v266
    %v268 = vlaneseq
    %v269 = vshrl.u32 %v268, 7
    %v270 = vsub.s32 1, %v269
    %v271 = vrot.slane %v262, %v270
    %v274 = vmul.f32 %v259, %v267
    %v275 = vmul.f32 %v260, %v271
    %276 = vrot.lane.b32.xlu0 %v192, 126
    %v277 = vpop.permute.xlu0 %276
    %278 = vrot.lane.b32.xlu0 %v193, 126
    %v279 = vpop.permute.xlu0 %278
    %vm280 = vcmp.lt.s32.totalorder %v199, 126
    %v281 = vsel %vm280, %v277, %v279
    %v282 = vsel %vm280, %v279, %v277
    %s283 = scalar_lea.vmem [#allocation6], 4
    %v284 = vld [vmem:[%s283] ss:$8 sm:$0x3]
    %v286 = vlaneseq
    %v287 = vshrl.u32 %v286, 7
    %v288 = vsub.s32 0, %v287
    %v289 = vrot.slane %v284, %v288
    %v290 = vlaneseq
    %v291 = vshrl.u32 %v290, 7
    %v292 = vsub.s32 1, %v291
    %v293 = vrot.slane %v284, %v292
    %v296 = vmul.f32 %v281, %v289
    %v297 = vmul.f32 %v282, %v293
    %v298 = vstv %s123
    %v299 = vmul.f32 %v298, %v215
    %v300 = vmul.f32 %v298, %v216
    %v301 = vstv %s148
    %v302 = vmul.f32 %v301, %v215
    %v303 = vmul.f32 %v301, %v216
    %v306 = vrot.slane %v302, 2
    %v307 = vrot.slane %v303, 2
    %v310 = vadd.f32 %v299, %v306
    %v311 = vadd.f32 %v300, %v307
    %v312 = vstv %s124
    %v313 = vmul.f32 %v312, %v237
    %v314 = vmul.f32 %v312, %v238
    %v315 = vstv %s149
    %v316 = vmul.f32 %v315, %v237
    %v317 = vmul.f32 %v315, %v238
    %v320 = vrot.slane %v316, 2
    %v321 = vrot.slane %v317, 2
    %v324 = vadd.f32 %v313, %v320
    %v325 = vadd.f32 %v314, %v321
    %v326 = vadd.f32 %v310, %v324
    %v327 = vadd.f32 %v311, %v325
    %v328 = vstv %s125
    %v329 = vmul.f32 %v328, %v252
    %v330 = vmul.f32 %v328, %v253
    %v331 = vstv %s150
    %v332 = vmul.f32 %v331, %v252
    %v333 = vmul.f32 %v331, %v253
    %v336 = vrot.slane %v332, 2
    %v337 = vrot.slane %v333, 2
    %v340 = vadd.f32 %v329, %v336
    %v341 = vadd.f32 %v330, %v337
    %v342 = vadd.f32 %v326, %v340
    %v343 = vadd.f32 %v327, %v341
    %v344 = vstv %s126
    %v345 = vmul.f32 %v344, %v274
    %v346 = vmul.f32 %v344, %v275
    %v347 = vstv %s151
    %v348 = vmul.f32 %v347, %v274
    %v349 = vmul.f32 %v347, %v275
    %v352 = vrot.slane %v348, 2
    %v353 = vrot.slane %v349, 2
    %v356 = vadd.f32 %v345, %v352
    %v357 = vadd.f32 %v346, %v353
    %v358 = vadd.f32 %v342, %v356
    %v359 = vadd.f32 %v343, %v357
    %v360 = vstv %s127
    %v361 = vmul.f32 %v360, %v296
    %v362 = vmul.f32 %v360, %v297
    %v363 = vstv %s152
    %v364 = vmul.f32 %v363, %v296
    %v365 = vmul.f32 %v363, %v297
    %v368 = vrot.slane %v364, 2
    %v369 = vrot.slane %v365, 2
    %v372 = vadd.f32 %v361, %v368
    %v373 = vadd.f32 %v362, %v369
    %v374 = vadd.f32 %v358, %v372
    %v375 = vadd.f32 %v359, %v373
    %v376 = vstv %s128
    %v377 = vmul.f32 %v376, %v215
    %v378 = vmul.f32 %v376, %v216
    %v379 = vstv %s153
    %v380 = vmul.f32 %v379, %v215
    %v381 = vmul.f32 %v379, %v216
    %v384 = vrot.slane %v380, 2
    %v385 = vrot.slane %v381, 2
    %v388 = vadd.f32 %v377, %v384
    %v389 = vadd.f32 %v378, %v385
    %v390 = vstv %s129
    %v391 = vmul.f32 %v390, %v237
    %v392 = vmul.f32 %v390, %v238
    %v393 = vstv %s154
    %v394 = vmul.f32 %v393, %v237
    %v395 = vmul.f32 %v393, %v238
    %v398 = vrot.slane %v394, 2
    %v399 = vrot.slane %v395, 2
    %v402 = vadd.f32 %v391, %v398
    %v403 = vadd.f32 %v392, %v399
    %v404 = vadd.f32 %v388, %v402
    %v405 = vadd.f32 %v389, %v403
    %v406 = vstv %s130
    %v407 = vmul.f32 %v406, %v252
    %v408 = vmul.f32 %v406, %v253
    %v409 = vstv %s155
    %v410 = vmul.f32 %v409, %v252
    %v411 = vmul.f32 %v409, %v253
    %v414 = vrot.slane %v410, 2
    %v415 = vrot.slane %v411, 2
    %v418 = vadd.f32 %v407, %v414
    %v419 = vadd.f32 %v408, %v415
    %v420 = vadd.f32 %v404, %v418
    %v421 = vadd.f32 %v405, %v419
    %v422 = vstv %s131
    %v423 = vmul.f32 %v422, %v274
    %v424 = vmul.f32 %v422, %v275
    %v425 = vstv %s156
    %v426 = vmul.f32 %v425, %v274
    %v427 = vmul.f32 %v425, %v275
    %v430 = vrot.slane %v426, 2
    %v431 = vrot.slane %v427, 2
    %v434 = vadd.f32 %v423, %v430
    %v435 = vadd.f32 %v424, %v431
    %v436 = vadd.f32 %v420, %v434
    %v437 = vadd.f32 %v421, %v435
    %v438 = vstv %s132
    %v439 = vmul.f32 %v438, %v296
    %v440 = vmul.f32 %v438, %v297
    %v441 = vstv %s157
    %v442 = vmul.f32 %v441, %v296
    %v443 = vmul.f32 %v441, %v297
    %v446 = vrot.slane %v442, 2
    %v447 = vrot.slane %v443, 2
    %v450 = vadd.f32 %v439, %v446
    %v451 = vadd.f32 %v440, %v447
    %v452 = vadd.f32 %v436, %v450
    %v453 = vadd.f32 %v437, %v451
    %v454 = vstv %s133
    %v455 = vmul.f32 %v454, %v215
    %v456 = vmul.f32 %v454, %v216
    %v457 = vstv %s158
    %v458 = vmul.f32 %v457, %v215
    %v459 = vmul.f32 %v457, %v216
    %v462 = vrot.slane %v458, 2
    %v463 = vrot.slane %v459, 2
    %v466 = vadd.f32 %v455, %v462
    %v467 = vadd.f32 %v456, %v463
    %v468 = vstv %s134
    %v469 = vmul.f32 %v468, %v237
    %v470 = vmul.f32 %v468, %v238
    %v471 = vstv %s159
    %v472 = vmul.f32 %v471, %v237
    %v473 = vmul.f32 %v471, %v238
    %v476 = vrot.slane %v472, 2
    %v477 = vrot.slane %v473, 2
    %v480 = vadd.f32 %v469, %v476
    %v481 = vadd.f32 %v470, %v477
    %v482 = vadd.f32 %v466, %v480
    %v483 = vadd.f32 %v467, %v481
    %v484 = vstv %s135
    %v485 = vmul.f32 %v484, %v252
    %v486 = vmul.f32 %v484, %v253
    %v487 = vstv %s160
    %v488 = vmul.f32 %v487, %v252
    %v489 = vmul.f32 %v487, %v253
    %v492 = vrot.slane %v488, 2
    %v493 = vrot.slane %v489, 2
    %v496 = vadd.f32 %v485, %v492
    %v497 = vadd.f32 %v486, %v493
    %v498 = vadd.f32 %v482, %v496
    %v499 = vadd.f32 %v483, %v497
    %v500 = vstv %s136
    %v501 = vmul.f32 %v500, %v274
    %v502 = vmul.f32 %v500, %v275
    %v503 = vstv %s161
    %v504 = vmul.f32 %v503, %v274
    %v505 = vmul.f32 %v503, %v275
    %v508 = vrot.slane %v504, 2
    %v509 = vrot.slane %v505, 2
    %v512 = vadd.f32 %v501, %v508
    %v513 = vadd.f32 %v502, %v509
    %v514 = vadd.f32 %v498, %v512
    %v515 = vadd.f32 %v499, %v513
    %v516 = vstv %s137
    %v517 = vmul.f32 %v516, %v296
    %v518 = vmul.f32 %v516, %v297
    %v519 = vstv %s162
    %v520 = vmul.f32 %v519, %v296
    %v521 = vmul.f32 %v519, %v297
    %v524 = vrot.slane %v520, 2
    %v525 = vrot.slane %v521, 2
    %v528 = vadd.f32 %v517, %v524
    %v529 = vadd.f32 %v518, %v525
    %v530 = vadd.f32 %v514, %v528
    %v531 = vadd.f32 %v515, %v529
    %v532 = vstv %s138
    %v533 = vmul.f32 %v532, %v215
    %v534 = vmul.f32 %v532, %v216
    %v535 = vstv %s163
    %v536 = vmul.f32 %v535, %v215
    %v537 = vmul.f32 %v535, %v216
    %v540 = vrot.slane %v536, 2
    %v541 = vrot.slane %v537, 2
    %v544 = vadd.f32 %v533, %v540
    %v545 = vadd.f32 %v534, %v541
    %v546 = vstv %s139
    %v547 = vmul.f32 %v546, %v237
    %v548 = vmul.f32 %v546, %v238
    %v549 = vstv %s164
    %v550 = vmul.f32 %v549, %v237
    %v551 = vmul.f32 %v549, %v238
    %v554 = vrot.slane %v550, 2
    %v555 = vrot.slane %v551, 2
    %v558 = vadd.f32 %v547, %v554
    %v559 = vadd.f32 %v548, %v555
    %v560 = vadd.f32 %v544, %v558
    %v561 = vadd.f32 %v545, %v559
    %v562 = vstv %s140
    %v563 = vmul.f32 %v562, %v252
    %v564 = vmul.f32 %v562, %v253
    %v565 = vstv %s165
    %v566 = vmul.f32 %v565, %v252
    %v567 = vmul.f32 %v565, %v253
    %v570 = vrot.slane %v566, 2
    %v571 = vrot.slane %v567, 2
    %v574 = vadd.f32 %v563, %v570
    %v575 = vadd.f32 %v564, %v571
    %v576 = vadd.f32 %v560, %v574
    %v577 = vadd.f32 %v561, %v575
    %v578 = vstv %s141
    %v579 = vmul.f32 %v578, %v274
    %v580 = vmul.f32 %v578, %v275
    %v581 = vstv %s166
    %v582 = vmul.f32 %v581, %v274
    %v583 = vmul.f32 %v581, %v275
    %v586 = vrot.slane %v582, 2
    %v587 = vrot.slane %v583, 2
    %v590 = vadd.f32 %v579, %v586
    %v591 = vadd.f32 %v580, %v587
    %v592 = vadd.f32 %v576, %v590
    %v593 = vadd.f32 %v577, %v591
    %v594 = vstv %s142
    %v595 = vmul.f32 %v594, %v296
    %v596 = vmul.f32 %v594, %v297
    %v597 = vstv %s167
    %v598 = vmul.f32 %v597, %v296
    %v599 = vmul.f32 %v597, %v297
    %v602 = vrot.slane %v598, 2
    %v603 = vrot.slane %v599, 2
    %v606 = vadd.f32 %v595, %v602
    %v607 = vadd.f32 %v596, %v603
    %v608 = vadd.f32 %v592, %v606
    %v609 = vadd.f32 %v593, %v607
    %v610 = vstv %s143
    %v611 = vmul.f32 %v610, %v215
    %v612 = vmul.f32 %v610, %v216
    %v613 = vstv %s168
    %v614 = vmul.f32 %v613, %v215
    %v615 = vmul.f32 %v613, %v216
    %v618 = vrot.slane %v614, 2
    %v619 = vrot.slane %v615, 2
    %v622 = vadd.f32 %v611, %v618
    %v623 = vadd.f32 %v612, %v619
    %v624 = vstv %s144
    %v625 = vmul.f32 %v624, %v237
    %v626 = vmul.f32 %v624, %v238
    %v627 = vstv %s169
    %v628 = vmul.f32 %v627, %v237
    %v629 = vmul.f32 %v627, %v238
    %v632 = vrot.slane %v628, 2
    %v633 = vrot.slane %v629, 2
    %v636 = vadd.f32 %v625, %v632
    %v637 = vadd.f32 %v626, %v633
    %v638 = vadd.f32 %v622, %v636
    %v639 = vadd.f32 %v623, %v637
    %v640 = vstv %s145
    %v641 = vmul.f32 %v640, %v252
    %v642 = vmul.f32 %v640, %v253
    %v643 = vstv %s170
    %v644 = vmul.f32 %v643, %v252
    %v645 = vmul.f32 %v643, %v253
    %v648 = vrot.slane %v644, 2
    %v649 = vrot.slane %v645, 2
    %v652 = vadd.f32 %v641, %v648
    %v653 = vadd.f32 %v642, %v649
    %v654 = vadd.f32 %v638, %v652
    %v655 = vadd.f32 %v639, %v653
    %v656 = vstv %s146
    %v657 = vmul.f32 %v656, %v274
    %v658 = vmul.f32 %v656, %v275
    %v659 = vstv %s171
    %v660 = vmul.f32 %v659, %v274
    %v661 = vmul.f32 %v659, %v275
    %v664 = vrot.slane %v660, 2
    %v665 = vrot.slane %v661, 2
    %v668 = vadd.f32 %v657, %v664
    %v669 = vadd.f32 %v658, %v665
    %v670 = vadd.f32 %v654, %v668
    %v671 = vadd.f32 %v655, %v669
    %v672 = vstv %s147
    %v673 = vmul.f32 %v672, %v296
    %v674 = vmul.f32 %v672, %v297
    %v675 = vstv %s172
    %v676 = vmul.f32 %v675, %v296
    %v677 = vmul.f32 %v675, %v297
    %v680 = vrot.slane %v676, 2
    %v681 = vrot.slane %v677, 2
    %v684 = vadd.f32 %v673, %v680
    %v685 = vadd.f32 %v674, %v681
    %v686 = vadd.f32 %v670, %v684
    %v687 = vadd.f32 %v671, %v685
    %688 = vrot.lane.b32.xlu0 %v374, 32
    %v689 = vpop.permute.xlu0 %688
    %690 = vrot.lane.b32.xlu0 %v375, 32
    %v691 = vpop.permute.xlu0 %690
    %vm692 = vcmp.lt.s32.totalorder %v199, 32
    %v693 = vsel %vm692, %v689, %v691
    %v694 = vsel %vm692, %v691, %v689
    %s695 = scalar_lea.vmem [#allocation6], 5
    %v696 = vld [vmem:[%s695] ss:$8 sm:$0x3]
    %v698 = vlaneseq
    %v699 = vshrl.u32 %v698, 7
    %v700 = vsub.s32 0, %v699
    %v701 = vrot.slane %v696, %v700
    %v702 = vlaneseq
    %v703 = vshrl.u32 %v702, 7
    %v704 = vsub.s32 1, %v703
    %v705 = vrot.slane %v696, %v704
    %v708 = vmul.f32 %v694, %v701
    %v709 = vmul.f32 %v693, %v705
    %710 = vrot.lane.b32.xlu0 %v452, 16
    %v711 = vpop.permute.xlu0 %710
    %712 = vrot.lane.b32.xlu0 %v453, 16
    %v713 = vpop.permute.xlu0 %712
    %vm714 = vcmp.lt.s32.totalorder %v199, 16
    %v715 = vsel %vm714, %v711, %v713
    %v716 = vsel %vm714, %v713, %v711
    %s717 = scalar_lea.vmem [#allocation6], 6
    %v718 = vld [vmem:[%s717] ss:$8 sm:$0x3]
    %v720 = vlaneseq
    %v721 = vshrl.u32 %v720, 7
    %v722 = vsub.s32 0, %v721
    %v723 = vrot.slane %v718, %v722
    %v724 = vlaneseq
    %v725 = vshrl.u32 %v724, 7
    %v726 = vsub.s32 1, %v725
    %v727 = vrot.slane %v718, %v726
    %v730 = vmul.f32 %v716, %v723
    %v731 = vmul.f32 %v715, %v727
    %v732 = vadd.f32 %v708, %v730
    %v733 = vadd.f32 %v709, %v731
    %s734 = scalar_lea.vmem [#allocation6], 7
    %v735 = vld [vmem:[%s734] ss:$8 sm:$0x3]
    %v737 = vlaneseq
    %v738 = vshrl.u32 %v737, 7
    %v739 = vsub.s32 0, %v738
    %v740 = vrot.slane %v735, %v739
    %v741 = vlaneseq
    %v742 = vshrl.u32 %v741, 7
    %v743 = vsub.s32 1, %v742
    %v744 = vrot.slane %v735, %v743
    %v747 = vmul.f32 %v530, %v740
    %v748 = vmul.f32 %v531, %v744
    %v749 = vadd.f32 %v732, %v747
    %v750 = vadd.f32 %v733, %v748
    %751 = vrot.lane.b32.xlu0 %v608, 112
    %v752 = vpop.permute.xlu0 %751
    %753 = vrot.lane.b32.xlu0 %v609, 112
    %v754 = vpop.permute.xlu0 %753
    %vm755 = vcmp.lt.s32.totalorder %v199, 112
    %v756 = vsel %vm755, %v752, %v754
    %v757 = vsel %vm755, %v754, %v752
    %s758 = scalar_lea.vmem [#allocation6], 16
    %v759 = vld [vmem:[%s758] ss:$8 sm:$0x3]
    %v761 = vlaneseq
    %v762 = vshrl.u32 %v761, 7
    %v763 = vsub.s32 0, %v762
    %v764 = vrot.slane %v759, %v763
    %v765 = vlaneseq
    %v766 = vshrl.u32 %v765, 7
    %v767 = vsub.s32 1, %v766
    %v768 = vrot.slane %v759, %v767
    %v771 = vmul.f32 %v756, %v764
    %v772 = vmul.f32 %v757, %v768
    %v773 = vadd.f32 %v749, %v771
    %v774 = vadd.f32 %v750, %v772
    %775 = vrot.lane.b32.xlu0 %v686, 96
    %v776 = vpop.permute.xlu0 %775
    %777 = vrot.lane.b32.xlu0 %v687, 96
    %v778 = vpop.permute.xlu0 %777
    %vm779 = vcmp.lt.s32.totalorder %v199, 96
    %v780 = vsel %vm779, %v776, %v778
    %v781 = vsel %vm779, %v778, %v776
    %s782 = scalar_lea.vmem [#allocation6], 17
    %v783 = vld [vmem:[%s782] ss:$8 sm:$0x3]
    %v785 = vlaneseq
    %v786 = vshrl.u32 %v785, 7
    %v787 = vsub.s32 0, %v786
    %v788 = vrot.slane %v783, %v787
    %v789 = vlaneseq
    %v790 = vshrl.u32 %v789, 7
    %v791 = vsub.s32 1, %v790
    %v792 = vrot.slane %v783, %v791
    %v795 = vmul.f32 %v780, %v788
    %v796 = vmul.f32 %v781, %v792
    %v797 = vadd.f32 %v773, %v795
    %v798 = vadd.f32 %v774, %v796
    %v799 = vmax.f32 %v797, 0.0
    %v800 = vmax.f32 %v798, 0.0
    %v801 = vxor.u32 %v799, 2147483648
    %v802 = vxor.u32 %v800, 2147483648
    %v803 = vmul.f32 %v801, 1.442695
    %v804 = vpow.pop %v803
    %v805 = vmul.f32 %v802, 1.442695
    %v806 = vpow.pop %v805
    %v807 = vadd.f32 %v804, 1.0
    %v808 = vadd.f32 %v806, 1.0
    %v809 = vrcp.pop %v807
    %v810 = vmul.f32 1.0, %v809
    %v811 = vrcp.pop %v808
    %v812 = vmul.f32 1.0, %v811
    %v815 = vcombine.low %v810, %v812
    %v817 = vunpack.c.l.s4 1966171168
    %v818 = vunpack.c.0.s8 %v817
    %v819 = vlaneseq
    %v820 = vshrl.u32 %v819, 7
    %v821 = vsub.s32 %v818, %v820
    %v822 = vrot.slane %v815, %v821
    %v823 = vcombine.high %v822, %v822
    %v825 = vunpack.c.l.s4 1966171168
    %v826 = vunpack.c.0.s8 %v825
    %v827 = vlaneseq
    %v828 = vshrl.u32 %v827, 7
    %v829 = vsub.s32 %v826, %v828
    %v830 = vrot.slane %v822, %v829
    %v832 = vunpack.c.l.s4 1966171168
    %v833 = vunpack.c.0.s8 %v832
    %v834 = vlaneseq
    %v835 = vshrl.u32 %v834, 7
    %v836 = vsub.s32 %v833, %v835
    %v837 = vrot.slane %v823, %v836
    %v838 = vlaneseq
    %v839 = vshrl.u32 %v838, 7
    %v840 = vsub.s32 0, %v839
    %v841 = vrot.slane %v830, %v840
    %v842 = vlaneseq
    %v843 = vshrl.u32 %v842, 7
    %v844 = vsub.s32 1, %v843
    %v845 = vrot.slane %v830, %v844
    %v846 = vlaneseq
    %v847 = vshrl.u32 %v846, 7
    %v848 = vsub.s32 0, %v847
    %v849 = vrot.slane %v837, %v848
    %v850 = vlaneseq
    %v851 = vshrl.u32 %v850, 7
    %v852 = vsub.s32 1, %v851
    %v853 = vrot.slane %v837, %v852
    %v854 = vcombine.low %v841, %v845
    %v855 = vcombine.low %v849, %v853
    %v858 = vmul.f32 %v54, %v854
    %v859 = vmul.f32 %v55, %v855
    %860 = vst [vmem:[#allocation9] sm:$0xff] %v858
    %861 = vst [vmem:[#allocation9 + $0x8] sm:$0xff] %v859
    // Predicated region
    $region26: #{tpu_custom_call.1} parent=1 // pred_check
      _
    $region27: #{tpu_custom_call.1} parent=1 // pred_check_branch
      %863 = sbr.rel (0) target = $region29
    $region28: #{tpu_custom_call.1} parent=1 // pred_region
      %s865 = ssub.s32 256, 256
      %866 = vsyncadd [#allocation4], %s865
      %s867 = sshll.u32 [#allocation9], 4
      %s868 = int_to_ptr.vmem [resolvable:$true] %s867
      %873 = dma.vmem_to_hbm [thread:$0]  %s868, 256, %s3, [#allocation4], 128, 128, 8
    $region29: #{tpu_custom_call.1} parent=1 // pred_fallthru
      _
    // Predicated region
    $region30: #{tpu_custom_call.1} parent=1 // pred_check
      _
    $region31: #{tpu_custom_call.1} parent=1 // pred_check_branch
      %875 = sbr.rel (0) target = $region33
    $region32: #{tpu_custom_call.1} parent=1 // pred_region
      %876 = dma.done [#allocation4], 256
    $region33: #{tpu_custom_call.1} parent=1 // pred_fallthru
      _
    %877 = vsyncpa [#allocation3], 1
    %878 = vsyncpa [#allocation8], 1
    %879 = vsyncpa [#allocation4], 1
    %880 = vsyncpa [#allocation5], 1

</llo_original>
